<compile_context>
chip_gen: v6e
topology: v6e:2x2x1
jax: 0.10.0
libtpu: 0.0.40
codegen_flags: <defaults>
</compile_context>

<pallas_src>
import jax
import jax.numpy as jnp
from jax import lax
from jax.experimental import pallas as pl
from jax.experimental.pallas import tpu as pltpu


# --------------------------------------------------------------------------
# Kernel
# --------------------------------------------------------------------------
def _linear_projection_kernel(lumi_ref, weff_t_ref, noise_ref, out_ref):
    # lumi_ref   : (tb, LX)   flattened lumitexels for this batch block
    # weff_t_ref : (3, LX)    lane-dense folded weight (sigmoid(W) x color)
    # noise_ref  : (tb, 3)    multiplicative noise (randn*std + 1), f32
    # out_ref    : (tb, 3)    noised measurements, f32
    meas = lax.dot_general(
        lumi_ref[...], weff_t_ref[...],
        dimension_numbers=(((1,), (1,)), ((), ())),
        preferred_element_type=jnp.float32)              # (tb, 3) f32
    out_ref[...] = (meas * noise_ref[...]).astype(out_ref.dtype)


# --------------------------------------------------------------------------
# Tiling / VMEM accounting helpers
# --------------------------------------------------------------------------
def _round_up(x, m):
    return ((x + m - 1) // m) * m


def _vmem_capacity_bytes():
    """Physical VMEM of the current chip; conservative 64 MiB (v7x) fallback."""
    try:
        info = pltpu.get_tpu_info()
        cap = getattr(info, "vmem_capacity_bytes", None)
        if cap:
            return int(cap)
    except Exception:
        pass
    return 64 << 20


def _vmem_footprint_bytes(tb, LX, lumi_itemsize):
    """Padded (8,128)-tile footprint of all double-buffered blocks."""
    lx_pad = _round_up(LX, 128)
    sub = 16 if lumi_itemsize == 2 else 8
    lumi = _round_up(tb, sub) * lx_pad * lumi_itemsize       # (tb, LX) block
    weff = _round_up(3, 8) * lx_pad * 4                      # (3, LX) f32 block
    small = 2 * _round_up(tb, 8) * 128 * 4                   # noise + out blocks
    return 2 * (lumi + weff + small)                         # double buffered


def _pick_batch_tile(B, LX, lumi_itemsize, vmem_cap):
    mult = 16 if lumi_itemsize == 2 else 8
    # Generation-aware ceiling: 4096 on 128 MiB chips (v5e/v6e), 2048 on 64 MiB (v7x).
    tb = 4096 if vmem_cap >= (96 << 20) else 2048
    budget = int(vmem_cap * 0.7)
    while tb > mult and _vmem_footprint_bytes(tb, LX, lumi_itemsize) + (1 << 20) > budget:
        tb //= 2
    # Keep >=2 grid steps for non-tiny batches so both v7x TensorCores get work.
    if B > 2 * mult:
        tb = min(tb, _round_up(pl.cdiv(B, 2), mult))
    # Never exceed the (padded) batch itself.
    tb = min(tb, _round_up(B, mult))
    tb = max(mult, (tb // mult) * mult)
    return tb


# --------------------------------------------------------------------------
# Wrapper
# --------------------------------------------------------------------------
def linear_projection_forward(lumitexels, W, color_tensor, noise):
    """lumitexels: (B, L, X) f32/bf16, W: (L, M) f32 (pre-sigmoid),
    color_tensor: (9, 3) f32, noise: (B, 3) f32 (already randn*std + 1).
    Returns (B, 1, 1, 3) f32, matching the PyTorch module."""
    B, L, X = lumitexels.shape
    M = W.shape[1]
    assert M * X == 9, "m_len * n_channels must equal 9 (color_tensor rows)"
    LX = L * X

    # Keep bf16 inputs bf16 (halves HBM traffic); everything else goes to f32.
    if lumitexels.dtype == jnp.bfloat16:
        lumi_flat = lumitexels.reshape(B, LX)
    else:
        lumi_flat = lumitexels.reshape(B, LX).astype(jnp.float32)
    itemsize = jnp.dtype(lumi_flat.dtype).itemsize

    # Fold sigmoid(W) and the color mix into one lane-dense (3, L*X) weight.
    sig_w = jax.nn.sigmoid(W.astype(jnp.float32))                  # (L, M)
    color_mx = color_tensor.reshape(M, X, 3).astype(jnp.float32)   # (M, X, 3)
    weff_t = (jnp.einsum('lm,mxc->clx', sig_w, color_mx)
              .reshape(3, LX).astype(lumi_flat.dtype))             # (3, LX)

    vmem_cap = _vmem_capacity_bytes()
    tb = _pick_batch_tile(B, LX, itemsize, vmem_cap)
    grid = (pl.cdiv(B, tb),)

    footprint = _vmem_footprint_bytes(tb, LX, itemsize)
    vmem_limit = int(min(max(footprint + (4 << 20), 16 << 20),
                         int(vmem_cap * 0.9)))

    out = pl.pallas_call(
        _linear_projection_kernel,
        out_shape=jax.ShapeDtypeStruct((B, 3), jnp.float32),
        grid=grid,
        in_specs=[
            pl.BlockSpec((tb, LX), lambda i: (i, 0)),
            pl.BlockSpec((3, LX), lambda i: (0, 0)),
            pl.BlockSpec((tb, 3), lambda i: (i, 0)),
        ],
        out_specs=pl.BlockSpec((tb, 3), lambda i: (i, 0)),
        compiler_params=pltpu.CompilerParams(
            dimension_semantics=("parallel",),
            vmem_limit_bytes=vmem_limit),
    )(lumi_flat, weff_t, noise.astype(jnp.float32))

    return out.reshape(B, 1, 1, 3)


# --------------------------------------------------------------------------
# Plain-JAX mirror of the PyTorch forward (noise precomputed)
# --------------------------------------------------------------------------
def reference_forward(lumitexels, W, color_tensor, noise):
    B = lumitexels.shape[0]
    sig_w = jax.nn.sigmoid(W)                                      # (L, M)
    meas = jnp.einsum('lm,blx->bmx', sig_w, lumitexels)            # (B, M, X)
    meas9 = meas.reshape(B, 1, 9)
    meas3 = jnp.matmul(meas9, color_tensor)[:, None]               # (B, 1, 1, 3)
    return meas3 * noise.reshape(B, 1, 1, 3)


if __name__ == "__main__":
    # Module hyper-parameters (m_len * channels == 9 is required by the reshape)
    B = 8            # batch
    L = 512          # lumitexel_length
    M = 3            # m_len (lighting patterns / channel)
    X = 3            # color channels of each lumitexel
    NOISE_STD = 0.01

    key = jax.random.PRNGKey(0)
    k_lumi, k_w, k_color, k_noise = jax.random.split(key, 4)

    # Deterministic parameter init (matches init_lighting_pattern: N(0, 1/sqrt(L)))
    W = (jax.random.normal(k_w, (L, M), dtype=jnp.float32) /
         jnp.sqrt(jnp.float32(L)))
    color_tensor = jax.random.uniform(k_color, (9, 3), dtype=jnp.float32)

    # Inputs
    lumitexels = jax.random.uniform(k_lumi, (B, L, X), dtype=jnp.float32)
    # TODO(synk): torch.randn_like noise is precomputed here with jax.random
    # (no in-kernel RNG needed); it broadcasts exactly like (B,1,1,3).
    noise = jax.random.normal(k_noise, (B, 3), dtype=jnp.float32) * NOISE_STD + 1.0

    out = linear_projection_forward(lumitexels, W, color_tensor, noise)
    out = jax.block_until_ready(out)

    ref = reference_forward(lumitexels, W, color_tensor, noise)
    assert out.shape == (B, 1, 1, 3)
    assert jnp.allclose(out, ref, rtol=1e-5, atol=1e-5), (
        f"mismatch: max abs err {jnp.max(jnp.abs(out - ref))}")

    print("KERNEL_OK")
</pallas_src>

<mosaic_0001>
module attributes {stable_mosaic.version = 11 : i64} {
  func.func @_linear_projection_kernel(%arg0: i32, %arg1: memref<8x1536xf32, #tpu.memory_space<vmem>>, %arg2: memref<3x1536xf32, #tpu.memory_space<vmem>>, %arg3: memref<8x3xf32, #tpu.memory_space<vmem>>, %arg4: memref<8x3xf32, #tpu.memory_space<vmem>>) attributes {dimension_semantics = [#tpu.dimension_semantics<parallel>], iteration_bounds = array<i64: 1>, scalar_prefetch = 0 : i64, scratch_operands = 0 : i64, tpu.core_type = #tpu.core_type<tc>, window_params = [{transform_indices = @transform_0, window_bounds = array<i64: 8, 1536>}, {pipeline_mode = #tpu.pipeline_mode<synchronous>, transform_indices = @transform_1, window_bounds = array<i64: 3, 1536>}, {transform_indices = @transform_2, window_bounds = array<i64: 8, 3>}, {transform_indices = @transform_3, window_bounds = array<i64: 8, 3>}]} {
    %c0 = arith.constant 0 : index
    %c0_0 = arith.constant 0 : index
    %0 = vector.load %arg1[%c0, %c0_0] : memref<8x1536xf32, #tpu.memory_space<vmem>>, vector<8x1536xf32>
    %c0_1 = arith.constant 0 : index
    %c0_2 = arith.constant 0 : index
    %1 = vector.load %arg2[%c0_1, %c0_2] : memref<3x1536xf32, #tpu.memory_space<vmem>>, vector<3x1536xf32>
    %cst = arith.constant dense<0.000000e+00> : vector<8x3xf32>
    %2 = tpu.matmul %0, %1, %cst {dimension_numbers = #tpu.dot_dimension_numbers<[1], [1], [0], [0], [0, 0, 1, 0], [], []>} : vector<8x1536xf32>, vector<3x1536xf32>, vector<8x3xf32> -> vector<8x3xf32>
    %c0_3 = arith.constant 0 : index
    %c0_4 = arith.constant 0 : index
    %3 = vector.load %arg3[%c0_3, %c0_4] : memref<8x3xf32, #tpu.memory_space<vmem>>, vector<8x3xf32>
    %4 = arith.mulf %2, %3 : vector<8x3xf32>
    %c0_5 = arith.constant 0 : index
    %c0_6 = arith.constant 0 : index
    %5 = vector.load %arg4[%c0_5, %c0_6] : memref<8x3xf32, #tpu.memory_space<vmem>>, vector<8x3xf32>
    tpu.vector_store %arg4[%c0_5, %c0_6], %4 {strides = array<i32>} : memref<8x3xf32, #tpu.memory_space<vmem>>, vector<8x3xf32>,
    return
  }
  func.func @transform_0(%arg0: i32) -> (i32, i32) {
    %c0_i32 = arith.constant 0 : i32
    %c0_i32_0 = arith.constant 0 : i32
    return %arg0, %c0_i32 : i32, i32
  }
  func.func @transform_1(%arg0: i32) -> (i32, i32) {
    %c0_i32 = arith.constant 0 : i32
    %c0_i32_0 = arith.constant 0 : i32
    %c0_i32_1 = arith.constant 0 : i32
    return %c0_i32, %c0_i32_0 : i32, i32
  }
  func.func @transform_2(%arg0: i32) -> (i32, i32) {
    %c0_i32 = arith.constant 0 : i32
    %c0_i32_0 = arith.constant 0 : i32
    return %arg0, %c0_i32 : i32, i32
  }
  func.func @transform_3(%arg0: i32) -> (i32, i32) {
    %c0_i32 = arith.constant 0 : i32
    %c0_i32_0 = arith.constant 0 : i32
    return %arg0, %c0_i32 : i32, i32
  }
}

</mosaic_0001>

<llo_original>
// kernel: tpu_custom_call.1
$region0: #{tpu_custom_call.1}
  #allocation0 [shape = 'u32[]', space=smem, size = 0x4, offset = 0x4, fixed_abs, tag = 'smem constant byte address 0x4 - core index']
  #allocation1 [shape = 'u32[144,128]{1,0:T(1,128)}', space=vmem, size = 0x12000, scoped, tag = 'internal scratch']
  %s0 = inlined_call_operand.hbm [shape: f32[8,1536], index: 0, kind: input, shape index: {}]
  %s1 = inlined_call_operand.hbm [shape: f32[3,1536], index: 1, kind: input, shape index: {}]
  %s2 = inlined_call_operand.vmem [shape: f32[8,3], index: 2, kind: input, shape index: {}]
  %s3 = inlined_call_operand.vmem [shape: f32[8,3], index: 3, kind: output, shape index: {}]
  %s4 = sld [smem:[#allocation0]]
  $region30: #{tpu_custom_call.1} parent=0
    _
  %s6 = ssub.s32 1, %s4
  %s7 = scalar_select 0, %s6, %s4
  $region1: #{tpu_custom_call.1} parent=0
    #allocation2 [shape = 'u8[49152]{0}', space=vmem, size = 0xc000, scoped, tag = 'input window, operand 0, single buffered']
    #allocation3 [shape = 's32[1]{0}', space=sflag, size = 0x4, scoped, tag = 'scoped memory for tpu_custom_call.1']
    #allocation4 [shape = 'u8[24576]{0}', space=vmem, size = 0x6000, scoped, tag = 'input window, operand 1, single buffered']
    #allocation5 [shape = 's32[1]{0}', space=sflag, size = 0x4, scoped, tag = 'scoped memory for tpu_custom_call.1']
    %8 = vsyncpa [#allocation3], 0
    %9 = vsyncpa [#allocation5], 0
    // Predicated region
    $region2: #{tpu_custom_call.1} parent=1 // pred_check
      _
    $region3: #{tpu_custom_call.1} parent=1 // pred_check_branch
      %11 = sbr.rel (0) target = $region5
    $region4: #{tpu_custom_call.1} parent=1 // pred_region
      %s13 = ssub.s32 1536, 1536
      %14 = vsyncadd [#allocation3], %s13
      %s16 = sshll.u32 [#allocation2], 4
      %s17 = int_to_ptr.vmem [resolvable:$true] %s16
      %19 = dma.hbm_to_vmem [thread:$0]  %s0, 1536, %s17, [#allocation3]
    $region5: #{tpu_custom_call.1} parent=1 // pred_fallthru
      _
    // Predicated region
    $region6: #{tpu_custom_call.1} parent=1 // pred_check
      _
    $region7: #{tpu_custom_call.1} parent=1 // pred_check_branch
      %21 = sbr.rel (0) target = $region9
    $region8: #{tpu_custom_call.1} parent=1 // pred_region
      %s23 = ssub.s32 768, 768
      %24 = vsyncadd [#allocation5], %s23
      %s26 = sshll.u32 [#allocation4], 4
      %s27 = int_to_ptr.vmem [resolvable:$true] %s26
      %29 = dma.hbm_to_vmem [thread:$0]  %s1, 768, %s27, [#allocation5]
    $region9: #{tpu_custom_call.1} parent=1 // pred_fallthru
      _
    // Predicated region
    $region10: #{tpu_custom_call.1} parent=1 // pred_check
      _
    $region11: #{tpu_custom_call.1} parent=1 // pred_check_branch
      %31 = sbr.rel (0) target = $region13
    $region12: #{tpu_custom_call.1} parent=1 // pred_region
      _
    $region13: #{tpu_custom_call.1} parent=1 // pred_fallthru
      _
    // Predicated region
    $region14: #{tpu_custom_call.1} parent=1 // pred_check
      _
    $region15: #{tpu_custom_call.1} parent=1 // pred_check_branch
      %33 = sbr.rel (0) target = $region17
    $region16: #{tpu_custom_call.1} parent=1 // pred_region
      %34 = dma.done [#allocation3], 1536
    $region17: #{tpu_custom_call.1} parent=1 // pred_fallthru
      _
    // Predicated region
    $region18: #{tpu_custom_call.1} parent=1 // pred_check
      _
    $region19: #{tpu_custom_call.1} parent=1 // pred_check_branch
      %36 = sbr.rel (0) target = $region21
    $region20: #{tpu_custom_call.1} parent=1 // pred_region
      %37 = dma.done [#allocation5], 768
    $region21: #{tpu_custom_call.1} parent=1 // pred_fallthru
      _
    %v38 = vld [vmem:[#allocation2] sm:$0xff]
    %v39 = vld [vmem:[#allocation2 + $0x8] sm:$0xff]
    %v40 = vld [vmem:[#allocation2 + $0x10] sm:$0xff]
    %v41 = vld [vmem:[#allocation2 + $0x18] sm:$0xff]
    %v42 = vld [vmem:[#allocation2 + $0x20] sm:$0xff]
    %v43 = vld [vmem:[#allocation2 + $0x28] sm:$0xff]
    %v44 = vld [vmem:[#allocation2 + $0x30] sm:$0xff]
    %v45 = vld [vmem:[#allocation2 + $0x38] sm:$0xff]
    %v46 = vld [vmem:[#allocation2 + $0x40] sm:$0xff]
    %v47 = vld [vmem:[#allocation2 + $0x48] sm:$0xff]
    %v48 = vld [vmem:[#allocation2 + $0x50] sm:$0xff]
    %v49 = vld [vmem:[#allocation2 + $0x58] sm:$0xff]
    %v50 = vld [vmem:[#allocation4] sm:$0x77]
    %v51 = vld [vmem:[#allocation4 + $0x8] sm:$0x77]
    %v52 = vld [vmem:[#allocation4 + $0x10] sm:$0x77]
    %v53 = vld [vmem:[#allocation4 + $0x18] sm:$0x77]
    %v54 = vld [vmem:[#allocation4 + $0x20] sm:$0x77]
    %v55 = vld [vmem:[#allocation4 + $0x28] sm:$0x77]
    %v62 = vcombine.high %v50, %v50
    %v63 = vcombine.high %v51, %v51
    %v64 = vcombine.high %v52, %v52
    %v65 = vcombine.high %v53, %v53
    %v66 = vcombine.high %v54, %v54
    %v67 = vcombine.high %v55, %v55
    %74 = vmatprep.subr.mxu0 0.0
    %75 = vmatpush1.xpose.msra.mxu0 0.0
    %76 = vmatprep.subr.mxu0 0.0
    %77 = vmatpush1.xpose.msra.mxu0 0.0
    %78 = vmatprep.subr.mxu0 0.0
    %79 = vmatpush1.xpose.msra.mxu0 0.0
    %80 = vmatprep.subr.mxu0 0.0
    %81 = vmatpush1.xpose.msra.mxu0 0.0
    %82 = vmatprep.subr.mxu0 0.0
    %83 = vmatpush1.xpose.msra.mxu0 0.0
    %84 = vmatprep.subr.mxu0 0.0
    %85 = vmatpush1.xpose.msra.mxu0 0.0
    %86 = vmatprep.subr.mxu0 0.0
    %87 = vmatpush1.xpose.msra.mxu0 0.0
    %88 = vmatprep.subr.mxu0 0.0
    %89 = vmatpush1.xpose.msra.mxu0 0.0
    %90 = vmatprep.subr.mxu0 0.0
    %91 = vmatpush1.xpose.msra.mxu0 0.0
    %92 = vmatprep.subr.mxu0 0.0
    %93 = vmatpush1.xpose.msra.mxu0 0.0
    %94 = vmatprep.subr.mxu0 0.0
    %95 = vmatpush1.xpose.msra.mxu0 0.0
    %96 = vmatprep.subr.mxu0 0.0
    %97 = vmatpush1.xpose.msra.mxu0 0.0
    %98 = vmatprep.subr.mxu0 0.0
    %99 = vmatpush1.xpose.msra.mxu0 0.0
    %100 = vmatprep.subr.mxu0 0.0
    %101 = vmatpush1.xpose.msra.mxu0 0.0
    %102 = vmatprep.subr.mxu0 0.0
    %103 = vmatpush1.xpose.msra.mxu0 0.0
    %104 = vmatprep.subr.mxu0 %v62
    %105 = vmatpush1.xpose.msra.mxu0 %v50
    %106 = vmatprep.subr.mxu0 0.0
    %107 = vmatpush2.xpose.msra.mxu0 0.0
    %108 = vmatprep.subr.mxu0 0.0
    %109 = vmatpush2.xpose.msra.mxu0 0.0
    %110 = vmatprep.subr.mxu0 0.0
    %111 = vmatpush2.xpose.msra.mxu0 0.0
    %112 = vmatprep.subr.mxu0 0.0
    %113 = vmatpush2.xpose.msra.mxu0 0.0
    %114 = vmatprep.subr.mxu0 0.0
    %115 = vmatpush2.xpose.msra.mxu0 0.0
    %116 = vmatprep.subr.mxu0 0.0
    %117 = vmatpush2.xpose.msra.mxu0 0.0
    %118 = vmatprep.subr.mxu0 0.0
    %119 = vmatpush2.xpose.msra.mxu0 0.0
    %120 = vmatprep.subr.mxu0 0.0
    %121 = vmatpush2.xpose.msra.mxu0 0.0
    %122 = vmatprep.subr.mxu0 0.0
    %123 = vmatpush2.xpose.msra.mxu0 0.0
    %124 = vmatprep.subr.mxu0 0.0
    %125 = vmatpush2.xpose.msra.mxu0 0.0
    %126 = vmatprep.subr.mxu0 0.0
    %127 = vmatpush2.xpose.msra.mxu0 0.0
    %128 = vmatprep.subr.mxu0 0.0
    %129 = vmatpush2.xpose.msra.mxu0 0.0
    %130 = vmatprep.subr.mxu0 0.0
    %131 = vmatpush2.xpose.msra.mxu0 0.0
    %132 = vmatprep.subr.mxu0 0.0
    %133 = vmatpush2.xpose.msra.mxu0 0.0
    %134 = vmatprep.subr.mxu0 0.0
    %135 = vmatpush2.xpose.msra.mxu0 0.0
    %136 = vmatprep.subr.mxu0 0.0
    %137 = vmatpush2.xpose.msra.mxu0 0.0
    %138 = vmatprep.mubr.f32.mxu0 %v39
    %139 = vmatmul.mubr.f32.gmra.mxu0 %v38
    %v140 = vpop.f32.mrf.mxu0
    %v141 = vadd.f32 0.0, %v140
    %v142 = vpop.f32.mrf.mxu0
    %143 = vdwg.mxu0
    %144 = vmatprep.subr.mxu0 0.0
    %145 = vmatpush1.xpose.msra.mxu0 0.0
    %146 = vmatprep.subr.mxu0 0.0
    %147 = vmatpush1.xpose.msra.mxu0 0.0
    %148 = vmatprep.subr.mxu0 0.0
    %149 = vmatpush1.xpose.msra.mxu0 0.0
    %150 = vmatprep.subr.mxu0 0.0
    %151 = vmatpush1.xpose.msra.mxu0 0.0
    %152 = vmatprep.subr.mxu0 0.0
    %153 = vmatpush1.xpose.msra.mxu0 0.0
    %154 = vmatprep.subr.mxu0 0.0
    %155 = vmatpush1.xpose.msra.mxu0 0.0
    %156 = vmatprep.subr.mxu0 0.0
    %157 = vmatpush1.xpose.msra.mxu0 0.0
    %158 = vmatprep.subr.mxu0 0.0
    %159 = vmatpush1.xpose.msra.mxu0 0.0
    %160 = vmatprep.subr.mxu0 0.0
    %161 = vmatpush1.xpose.msra.mxu0 0.0
    %162 = vmatprep.subr.mxu0 0.0
    %163 = vmatpush1.xpose.msra.mxu0 0.0
    %164 = vmatprep.subr.mxu0 0.0
    %165 = vmatpush1.xpose.msra.mxu0 0.0
    %166 = vmatprep.subr.mxu0 0.0
    %167 = vmatpush1.xpose.msra.mxu0 0.0
    %168 = vmatprep.subr.mxu0 0.0
    %169 = vmatpush1.xpose.msra.mxu0 0.0
    %170 = vmatprep.subr.mxu0 0.0
    %171 = vmatpush1.xpose.msra.mxu0 0.0
    %172 = vmatprep.subr.mxu0 0.0
    %173 = vmatpush1.xpose.msra.mxu0 0.0
    %174 = vmatprep.subr.mxu0 %v63
    %175 = vmatpush1.xpose.msra.mxu0 %v51
    %176 = vmatprep.subr.mxu0 0.0
    %177 = vmatpush2.xpose.msra.mxu0 0.0
    %178 = vmatprep.subr.mxu0 0.0
    %179 = vmatpush2.xpose.msra.mxu0 0.0
    %180 = vmatprep.subr.mxu0 0.0
    %181 = vmatpush2.xpose.msra.mxu0 0.0
    %182 = vmatprep.subr.mxu0 0.0
    %183 = vmatpush2.xpose.msra.mxu0 0.0
    %184 = vmatprep.subr.mxu0 0.0
    %185 = vmatpush2.xpose.msra.mxu0 0.0
    %186 = vmatprep.subr.mxu0 0.0
    %187 = vmatpush2.xpose.msra.mxu0 0.0
    %188 = vmatprep.subr.mxu0 0.0
    %189 = vmatpush2.xpose.msra.mxu0 0.0
    %190 = vmatprep.subr.mxu0 0.0
    %191 = vmatpush2.xpose.msra.mxu0 0.0
    %192 = vmatprep.subr.mxu0 0.0
    %193 = vmatpush2.xpose.msra.mxu0 0.0
    %194 = vmatprep.subr.mxu0 0.0
    %195 = vmatpush2.xpose.msra.mxu0 0.0
    %196 = vmatprep.subr.mxu0 0.0
    %197 = vmatpush2.xpose.msra.mxu0 0.0
    %198 = vmatprep.subr.mxu0 0.0
    %199 = vmatpush2.xpose.msra.mxu0 0.0
    %200 = vmatprep.subr.mxu0 0.0
    %201 = vmatpush2.xpose.msra.mxu0 0.0
    %202 = vmatprep.subr.mxu0 0.0
    %203 = vmatpush2.xpose.msra.mxu0 0.0
    %204 = vmatprep.subr.mxu0 0.0
    %205 = vmatpush2.xpose.msra.mxu0 0.0
    %206 = vmatprep.subr.mxu0 0.0
    %207 = vmatpush2.xpose.msra.mxu0 0.0
    %208 = vmatprep.mubr.f32.mxu0 %v41
    %209 = vmatmul.mubr.f32.gmra.mxu0 %v40
    %v210 = vpop.f32.mrf.mxu0
    %v211 = vadd.f32 %v141, %v210
    %v212 = vpop.f32.mrf.mxu0
    %213 = vdwg.mxu0
    %214 = vmatprep.subr.mxu0 0.0
    %215 = vmatpush1.xpose.msra.mxu0 0.0
    %216 = vmatprep.subr.mxu0 0.0
    %217 = vmatpush1.xpose.msra.mxu0 0.0
    %218 = vmatprep.subr.mxu0 0.0
    %219 = vmatpush1.xpose.msra.mxu0 0.0
    %220 = vmatprep.subr.mxu0 0.0
    %221 = vmatpush1.xpose.msra.mxu0 0.0
    %222 = vmatprep.subr.mxu0 0.0
    %223 = vmatpush1.xpose.msra.mxu0 0.0
    %224 = vmatprep.subr.mxu0 0.0
    %225 = vmatpush1.xpose.msra.mxu0 0.0
    %226 = vmatprep.subr.mxu0 0.0
    %227 = vmatpush1.xpose.msra.mxu0 0.0
    %228 = vmatprep.subr.mxu0 0.0
    %229 = vmatpush1.xpose.msra.mxu0 0.0
    %230 = vmatprep.subr.mxu0 0.0
    %231 = vmatpush1.xpose.msra.mxu0 0.0
    %232 = vmatprep.subr.mxu0 0.0
    %233 = vmatpush1.xpose.msra.mxu0 0.0
    %234 = vmatprep.subr.mxu0 0.0
    %235 = vmatpush1.xpose.msra.mxu0 0.0
    %236 = vmatprep.subr.mxu0 0.0
    %237 = vmatpush1.xpose.msra.mxu0 0.0
    %238 = vmatprep.subr.mxu0 0.0
    %239 = vmatpush1.xpose.msra.mxu0 0.0
    %240 = vmatprep.subr.mxu0 0.0
    %241 = vmatpush1.xpose.msra.mxu0 0.0
    %242 = vmatprep.subr.mxu0 0.0
    %243 = vmatpush1.xpose.msra.mxu0 0.0
    %244 = vmatprep.subr.mxu0 %v64
    %245 = vmatpush1.xpose.msra.mxu0 %v52
    %246 = vmatprep.subr.mxu0 0.0
    %247 = vmatpush2.xpose.msra.mxu0 0.0
    %248 = vmatprep.subr.mxu0 0.0
    %249 = vmatpush2.xpose.msra.mxu0 0.0
    %250 = vmatprep.subr.mxu0 0.0
    %251 = vmatpush2.xpose.msra.mxu0 0.0
    %252 = vmatprep.subr.mxu0 0.0
    %253 = vmatpush2.xpose.msra.mxu0 0.0
    %254 = vmatprep.subr.mxu0 0.0
    %255 = vmatpush2.xpose.msra.mxu0 0.0
    %256 = vmatprep.subr.mxu0 0.0
    %257 = vmatpush2.xpose.msra.mxu0 0.0
    %258 = vmatprep.subr.mxu0 0.0
    %259 = vmatpush2.xpose.msra.mxu0 0.0
    %260 = vmatprep.subr.mxu0 0.0
    %261 = vmatpush2.xpose.msra.mxu0 0.0
    %262 = vmatprep.subr.mxu0 0.0
    %263 = vmatpush2.xpose.msra.mxu0 0.0
    %264 = vmatprep.subr.mxu0 0.0
    %265 = vmatpush2.xpose.msra.mxu0 0.0
    %266 = vmatprep.subr.mxu0 0.0
    %267 = vmatpush2.xpose.msra.mxu0 0.0
    %268 = vmatprep.subr.mxu0 0.0
    %269 = vmatpush2.xpose.msra.mxu0 0.0
    %270 = vmatprep.subr.mxu0 0.0
    %271 = vmatpush2.xpose.msra.mxu0 0.0
    %272 = vmatprep.subr.mxu0 0.0
    %273 = vmatpush2.xpose.msra.mxu0 0.0
    %274 = vmatprep.subr.mxu0 0.0
    %275 = vmatpush2.xpose.msra.mxu0 0.0
    %276 = vmatprep.subr.mxu0 0.0
    %277 = vmatpush2.xpose.msra.mxu0 0.0
    %278 = vmatprep.mubr.f32.mxu0 %v43
    %279 = vmatmul.mubr.f32.gmra.mxu0 %v42
    %v280 = vpop.f32.mrf.mxu0
    %v281 = vadd.f32 %v211, %v280
    %v282 = vpop.f32.mrf.mxu0
    %283 = vdwg.mxu0
    %284 = vmatprep.subr.mxu0 0.0
    %285 = vmatpush1.xpose.msra.mxu0 0.0
    %286 = vmatprep.subr.mxu0 0.0
    %287 = vmatpush1.xpose.msra.mxu0 0.0
    %288 = vmatprep.subr.mxu0 0.0
    %289 = vmatpush1.xpose.msra.mxu0 0.0
    %290 = vmatprep.subr.mxu0 0.0
    %291 = vmatpush1.xpose.msra.mxu0 0.0
    %292 = vmatprep.subr.mxu0 0.0
    %293 = vmatpush1.xpose.msra.mxu0 0.0
    %294 = vmatprep.subr.mxu0 0.0
    %295 = vmatpush1.xpose.msra.mxu0 0.0
    %296 = vmatprep.subr.mxu0 0.0
    %297 = vmatpush1.xpose.msra.mxu0 0.0
    %298 = vmatprep.subr.mxu0 0.0
    %299 = vmatpush1.xpose.msra.mxu0 0.0
    %300 = vmatprep.subr.mxu0 0.0
    %301 = vmatpush1.xpose.msra.mxu0 0.0
    %302 = vmatprep.subr.mxu0 0.0
    %303 = vmatpush1.xpose.msra.mxu0 0.0
    %304 = vmatprep.subr.mxu0 0.0
    %305 = vmatpush1.xpose.msra.mxu0 0.0
    %306 = vmatprep.subr.mxu0 0.0
    %307 = vmatpush1.xpose.msra.mxu0 0.0
    %308 = vmatprep.subr.mxu0 0.0
    %309 = vmatpush1.xpose.msra.mxu0 0.0
    %310 = vmatprep.subr.mxu0 0.0
    %311 = vmatpush1.xpose.msra.mxu0 0.0
    %312 = vmatprep.subr.mxu0 0.0
    %313 = vmatpush1.xpose.msra.mxu0 0.0
    %314 = vmatprep.subr.mxu0 %v65
    %315 = vmatpush1.xpose.msra.mxu0 %v53
    %316 = vmatprep.subr.mxu0 0.0
    %317 = vmatpush2.xpose.msra.mxu0 0.0
    %318 = vmatprep.subr.mxu0 0.0
    %319 = vmatpush2.xpose.msra.mxu0 0.0
    %320 = vmatprep.subr.mxu0 0.0
    %321 = vmatpush2.xpose.msra.mxu0 0.0
    %322 = vmatprep.subr.mxu0 0.0
    %323 = vmatpush2.xpose.msra.mxu0 0.0
    %324 = vmatprep.subr.mxu0 0.0
    %325 = vmatpush2.xpose.msra.mxu0 0.0
    %326 = vmatprep.subr.mxu0 0.0
    %327 = vmatpush2.xpose.msra.mxu0 0.0
    %328 = vmatprep.subr.mxu0 0.0
    %329 = vmatpush2.xpose.msra.mxu0 0.0
    %330 = vmatprep.subr.mxu0 0.0
    %331 = vmatpush2.xpose.msra.mxu0 0.0
    %332 = vmatprep.subr.mxu0 0.0
    %333 = vmatpush2.xpose.msra.mxu0 0.0
    %334 = vmatprep.subr.mxu0 0.0
    %335 = vmatpush2.xpose.msra.mxu0 0.0
    %336 = vmatprep.subr.mxu0 0.0
    %337 = vmatpush2.xpose.msra.mxu0 0.0
    %338 = vmatprep.subr.mxu0 0.0
    %339 = vmatpush2.xpose.msra.mxu0 0.0
    %340 = vmatprep.subr.mxu0 0.0
    %341 = vmatpush2.xpose.msra.mxu0 0.0
    %342 = vmatprep.subr.mxu0 0.0
    %343 = vmatpush2.xpose.msra.mxu0 0.0
    %344 = vmatprep.subr.mxu0 0.0
    %345 = vmatpush2.xpose.msra.mxu0 0.0
    %346 = vmatprep.subr.mxu0 0.0
    %347 = vmatpush2.xpose.msra.mxu0 0.0
    %348 = vmatprep.mubr.f32.mxu0 %v45
    %349 = vmatmul.mubr.f32.gmra.mxu0 %v44
    %v350 = vpop.f32.mrf.mxu0
    %v351 = vadd.f32 %v281, %v350
    %v352 = vpop.f32.mrf.mxu0
    %353 = vdwg.mxu0
    %354 = vmatprep.subr.mxu0 0.0
    %355 = vmatpush1.xpose.msra.mxu0 0.0
    %356 = vmatprep.subr.mxu0 0.0
    %357 = vmatpush1.xpose.msra.mxu0 0.0
    %358 = vmatprep.subr.mxu0 0.0
    %359 = vmatpush1.xpose.msra.mxu0 0.0
    %360 = vmatprep.subr.mxu0 0.0
    %361 = vmatpush1.xpose.msra.mxu0 0.0
    %362 = vmatprep.subr.mxu0 0.0
    %363 = vmatpush1.xpose.msra.mxu0 0.0
    %364 = vmatprep.subr.mxu0 0.0
    %365 = vmatpush1.xpose.msra.mxu0 0.0
    %366 = vmatprep.subr.mxu0 0.0
    %367 = vmatpush1.xpose.msra.mxu0 0.0
    %368 = vmatprep.subr.mxu0 0.0
    %369 = vmatpush1.xpose.msra.mxu0 0.0
    %370 = vmatprep.subr.mxu0 0.0
    %371 = vmatpush1.xpose.msra.mxu0 0.0
    %372 = vmatprep.subr.mxu0 0.0
    %373 = vmatpush1.xpose.msra.mxu0 0.0
    %374 = vmatprep.subr.mxu0 0.0
    %375 = vmatpush1.xpose.msra.mxu0 0.0
    %376 = vmatprep.subr.mxu0 0.0
    %377 = vmatpush1.xpose.msra.mxu0 0.0
    %378 = vmatprep.subr.mxu0 0.0
    %379 = vmatpush1.xpose.msra.mxu0 0.0
    %380 = vmatprep.subr.mxu0 0.0
    %381 = vmatpush1.xpose.msra.mxu0 0.0
    %382 = vmatprep.subr.mxu0 0.0
    %383 = vmatpush1.xpose.msra.mxu0 0.0
    %384 = vmatprep.subr.mxu0 %v66
    %385 = vmatpush1.xpose.msra.mxu0 %v54
    %386 = vmatprep.subr.mxu0 0.0
    %387 = vmatpush2.xpose.msra.mxu0 0.0
    %388 = vmatprep.subr.mxu0 0.0
    %389 = vmatpush2.xpose.msra.mxu0 0.0
    %390 = vmatprep.subr.mxu0 0.0
    %391 = vmatpush2.xpose.msra.mxu0 0.0
    %392 = vmatprep.subr.mxu0 0.0
    %393 = vmatpush2.xpose.msra.mxu0 0.0
    %394 = vmatprep.subr.mxu0 0.0
    %395 = vmatpush2.xpose.msra.mxu0 0.0
    %396 = vmatprep.subr.mxu0 0.0
    %397 = vmatpush2.xpose.msra.mxu0 0.0
    %398 = vmatprep.subr.mxu0 0.0
    %399 = vmatpush2.xpose.msra.mxu0 0.0
    %400 = vmatprep.subr.mxu0 0.0
    %401 = vmatpush2.xpose.msra.mxu0 0.0
    %402 = vmatprep.subr.mxu0 0.0
    %403 = vmatpush2.xpose.msra.mxu0 0.0
    %404 = vmatprep.subr.mxu0 0.0
    %405 = vmatpush2.xpose.msra.mxu0 0.0
    %406 = vmatprep.subr.mxu0 0.0
    %407 = vmatpush2.xpose.msra.mxu0 0.0
    %408 = vmatprep.subr.mxu0 0.0
    %409 = vmatpush2.xpose.msra.mxu0 0.0
    %410 = vmatprep.subr.mxu0 0.0
    %411 = vmatpush2.xpose.msra.mxu0 0.0
    %412 = vmatprep.subr.mxu0 0.0
    %413 = vmatpush2.xpose.msra.mxu0 0.0
    %414 = vmatprep.subr.mxu0 0.0
    %415 = vmatpush2.xpose.msra.mxu0 0.0
    %416 = vmatprep.subr.mxu0 0.0
    %417 = vmatpush2.xpose.msra.mxu0 0.0
    %418 = vmatprep.mubr.f32.mxu0 %v47
    %419 = vmatmul.mubr.f32.gmra.mxu0 %v46
    %v420 = vpop.f32.mrf.mxu0
    %v421 = vadd.f32 %v351, %v420
    %v422 = vpop.f32.mrf.mxu0
    %423 = vdwg.mxu0
    %424 = vmatprep.subr.mxu0 0.0
    %425 = vmatpush1.xpose.msra.mxu0 0.0
    %426 = vmatprep.subr.mxu0 0.0
    %427 = vmatpush1.xpose.msra.mxu0 0.0
    %428 = vmatprep.subr.mxu0 0.0
    %429 = vmatpush1.xpose.msra.mxu0 0.0
    %430 = vmatprep.subr.mxu0 0.0
    %431 = vmatpush1.xpose.msra.mxu0 0.0
    %432 = vmatprep.subr.mxu0 0.0
    %433 = vmatpush1.xpose.msra.mxu0 0.0
    %434 = vmatprep.subr.mxu0 0.0
    %435 = vmatpush1.xpose.msra.mxu0 0.0
    %436 = vmatprep.subr.mxu0 0.0
    %437 = vmatpush1.xpose.msra.mxu0 0.0
    %438 = vmatprep.subr.mxu0 0.0
    %439 = vmatpush1.xpose.msra.mxu0 0.0
    %440 = vmatprep.subr.mxu0 0.0
    %441 = vmatpush1.xpose.msra.mxu0 0.0
    %442 = vmatprep.subr.mxu0 0.0
    %443 = vmatpush1.xpose.msra.mxu0 0.0
    %444 = vmatprep.subr.mxu0 0.0
    %445 = vmatpush1.xpose.msra.mxu0 0.0
    %446 = vmatprep.subr.mxu0 0.0
    %447 = vmatpush1.xpose.msra.mxu0 0.0
    %448 = vmatprep.subr.mxu0 0.0
    %449 = vmatpush1.xpose.msra.mxu0 0.0
    %450 = vmatprep.subr.mxu0 0.0
    %451 = vmatpush1.xpose.msra.mxu0 0.0
    %452 = vmatprep.subr.mxu0 0.0
    %453 = vmatpush1.xpose.msra.mxu0 0.0
    %454 = vmatprep.subr.mxu0 %v67
    %455 = vmatpush1.xpose.msra.mxu0 %v55
    %456 = vmatprep.subr.mxu0 0.0
    %457 = vmatpush2.xpose.msra.mxu0 0.0
    %458 = vmatprep.subr.mxu0 0.0
    %459 = vmatpush2.xpose.msra.mxu0 0.0
    %460 = vmatprep.subr.mxu0 0.0
    %461 = vmatpush2.xpose.msra.mxu0 0.0
    %462 = vmatprep.subr.mxu0 0.0
    %463 = vmatpush2.xpose.msra.mxu0 0.0
    %464 = vmatprep.subr.mxu0 0.0
    %465 = vmatpush2.xpose.msra.mxu0 0.0
    %466 = vmatprep.subr.mxu0 0.0
    %467 = vmatpush2.xpose.msra.mxu0 0.0
    %468 = vmatprep.subr.mxu0 0.0
    %469 = vmatpush2.xpose.msra.mxu0 0.0
    %470 = vmatprep.subr.mxu0 0.0
    %471 = vmatpush2.xpose.msra.mxu0 0.0
    %472 = vmatprep.subr.mxu0 0.0
    %473 = vmatpush2.xpose.msra.mxu0 0.0
    %474 = vmatprep.subr.mxu0 0.0
    %475 = vmatpush2.xpose.msra.mxu0 0.0
    %476 = vmatprep.subr.mxu0 0.0
    %477 = vmatpush2.xpose.msra.mxu0 0.0
    %478 = vmatprep.subr.mxu0 0.0
    %479 = vmatpush2.xpose.msra.mxu0 0.0
    %480 = vmatprep.subr.mxu0 0.0
    %481 = vmatpush2.xpose.msra.mxu0 0.0
    %482 = vmatprep.subr.mxu0 0.0
    %483 = vmatpush2.xpose.msra.mxu0 0.0
    %484 = vmatprep.subr.mxu0 0.0
    %485 = vmatpush2.xpose.msra.mxu0 0.0
    %486 = vmatprep.subr.mxu0 0.0
    %487 = vmatpush2.xpose.msra.mxu0 0.0
    %488 = vmatprep.mubr.f32.mxu0 %v49
    %489 = vmatmul.mubr.f32.gmra.mxu0 %v48
    %v490 = vpop.f32.mrf.mxu0
    %v491 = vadd.f32 %v421, %v490
    %v492 = vpop.f32.mrf.mxu0
    %493 = vdwg.mxu0
    %v494 = vld [vmem:[%s2] sm:$0xff]
    %v495 = vmul.f32 %v491, %v494
    %vm496 = vcmask 23552
    %497 = vst.msk [vmem:[%s3] sm:$0xff] %vm496, %v495
    // Predicated region
    $region22: #{tpu_custom_call.1} parent=1 // pred_check
      _
    $region23: #{tpu_custom_call.1} parent=1 // pred_check_branch
      %499 = sbr.rel (0) target = $region25
    $region24: #{tpu_custom_call.1} parent=1 // pred_region
      _
    $region25: #{tpu_custom_call.1} parent=1 // pred_fallthru
      _
    // Predicated region
    $region26: #{tpu_custom_call.1} parent=1 // pred_check
      _
    $region27: #{tpu_custom_call.1} parent=1 // pred_check_branch
      %501 = sbr.rel (0) target = $region29
    $region28: #{tpu_custom_call.1} parent=1 // pred_region
      _
    $region29: #{tpu_custom_call.1} parent=1 // pred_fallthru
      _
    %502 = vsyncpa [#allocation3], 1
    %503 = vsyncpa [#allocation5], 1

</llo_original>
